<compile_context>
chip_gen: v5e
topology: v5e:2x2
jax: 0.10.0
libtpu: 0.0.40
codegen_flags: <defaults>
</compile_context>

<pallas_src>
import numpy as np
import jax
import jax.numpy as jnp
from jax.experimental import pallas as pl
from jax.experimental.pallas import tpu as pltpu

# ----------------------------- model config ---------------------------------
INPUT_DIM = 2      # from "input_dim_2_LSTM_GRU_RNN.py"
HIDDEN_DIM = 20    # hidden_dim = [20]
OUTPUT_DIM = 1
N_LAYERS = 2
BATCH = 4
SEQ = 8


# --------------------------- fused Pallas kernel ------------------------------
def make_fused_rnn_kernel(n_layers, T, B):
    """Build the fused forward kernel for fixed (n_layers, T, B)."""

    def kernel(*refs):
        # inputs: x, h0, [w_ih^T, w_hh^T, b] per layer, w_fc_row, b_fc
        # outputs: out (B, 1), h_out (n_layers, B, H)
        x_ref, h0_ref = refs[0], refs[1]
        layer_refs = refs[2:2 + 3 * n_layers]
        wfc_ref = refs[2 + 3 * n_layers]          # (1, H)
        bfc_ref = refs[3 + 3 * n_layers]          # (1, 1)
        out_ref = refs[4 + 3 * n_layers]          # (B, 1)
        hout_ref = refs[5 + 3 * n_layers]         # (n_layers, B, H)

        H = h0_ref.shape[2]

        # ---- layer 0: input projection hoisted out of the serial loop -------
        wih0 = layer_refs[0][...]                 # (Din, H)
        whh0 = layer_refs[1][...]                 # (H, H)
        b0 = layer_refs[2][...]                   # (1, H)
        # one matmul for all time steps: row t*B + b  <->  (t, b)
        xproj = jnp.dot(x_ref[...], wih0,
                        preferred_element_type=jnp.float32) + b0   # (T*B, H)

        h = h0_ref[0]                             # (B, H)
        hs = []
        for t in range(T):                        # fully unrolled (T static)
            pre = xproj[t * B:(t + 1) * B, :] + jnp.dot(
                h, whh0, preferred_element_type=jnp.float32)
            h = jnp.tanh(pre)
            hs.append(h)
        hout_ref[0] = h

        # ---- deeper layers (inference: inter-layer dropout == identity) -----
        for l in range(1, n_layers):
            wih = layer_refs[3 * l][...]          # (H, H)
            whh = layer_refs[3 * l + 1][...]      # (H, H)
            b = jnp.broadcast_to(layer_refs[3 * l + 2][...], (B, H))  # hoisted
            h = h0_ref[l]
            new_hs = []
            for t in range(T):
                # proj_t depends only on the previous layer's h_t, so the
                # unrolled scheduler moves it off the serial critical path.
                proj_t = jnp.dot(hs[t], wih,
                                 preferred_element_type=jnp.float32) + b
                h = jnp.tanh(proj_t + jnp.dot(
                    h, whh, preferred_element_type=jnp.float32))
                new_hs.append(h)
            hs = new_hs
            hout_ref[l] = h

        # ---- epilogue: out = ReLU(out[:, -1]) @ W_fc^T + b_fc ---------------
        # out[:, -1] of the RNN == final hidden state of the last layer.
        # OUTPUT_DIM == 1 -> VPU multiply + lane reduce (no MXU matmul).
        # TODO(synk): epilogue assumes output_dim == 1 (as in the module spec);
        #             a wider FC head would use an MXU matmul instead.
        relu_h = jnp.maximum(hs[-1], 0.0)                         # (B, H)
        out_ref[...] = (jnp.sum(relu_h * wfc_ref[...], axis=-1, keepdims=True)
                        + bfc_ref[...])

    return kernel


# --------------------------- wrappers ----------------------------------------
def prepare_params(params, n_layers):
    """Precompute transposed weights and fused biases ONCE (outside forward)."""
    prepared = []
    for l in range(n_layers):
        prepared.append(jnp.transpose(params[f"w_ih_l{l}"]))             # (Din, H)
        prepared.append(jnp.transpose(params[f"w_hh_l{l}"]))             # (H, H)
        prepared.append((params[f"b_ih_l{l}"]
                         + params[f"b_hh_l{l}"]).reshape(1, -1))         # (1, H)
    prepared.append(params["w_fc"].reshape(1, -1))                       # (1, H)
    prepared.append(params["b_fc"].reshape(1, 1))                        # (1, 1)
    return prepared


def rnn_net_forward(x, h0, prepared):
    """x: (B, T, input_dim) batch-first, h0: (L, B, H)
       -> (out: (B, output_dim), h: (L, B, H))"""
    B, T, Din = x.shape
    L, _, H = h0.shape
    # time-major + flattened so the kernel can do one hoisted input projection
    x_tm = jnp.transpose(x, (1, 0, 2)).reshape(T * B, Din)

    kernel = make_fused_rnn_kernel(L, T, B)
    inputs = (x_tm, h0, *prepared)

    flops = (2 * T * B * Din * H              # layer-0 input projection
             + L * T * 2 * B * H * H          # recurrent matmuls
             + (L - 1) * T * 2 * B * H * H    # deeper-layer input projections
             + 2 * B * H)                     # fc head
    bytes_accessed = 4 * (sum(int(np.prod(a.shape)) for a in inputs)
                          + B * OUTPUT_DIM + L * B * H)
    cost = pl.CostEstimate(flops=flops,
                           transcendentals=L * T * B * H,
                           bytes_accessed=bytes_accessed)

    out, h_out = pl.pallas_call(
        kernel,
        out_shape=(jax.ShapeDtypeStruct((B, OUTPUT_DIM), jnp.float32),
                   jax.ShapeDtypeStruct((L, B, H), jnp.float32)),
        in_specs=[pl.BlockSpec(memory_space=pltpu.MemorySpace.VMEM)
                  for _ in inputs],
        out_specs=(pl.BlockSpec(memory_space=pltpu.MemorySpace.VMEM),
                   pl.BlockSpec(memory_space=pltpu.MemorySpace.VMEM)),
        cost_estimate=cost,
    )(*inputs)
    return out, h_out


rnn_net_forward_jit = jax.jit(rnn_net_forward)


# ------------------------ pure-JAX reference ---------------------------------
def rnn_net_reference(x, h0, params):
    B, T, _ = x.shape
    layer_in = x
    h_finals = []
    for l in range(N_LAYERS):
        wih = params[f"w_ih_l{l}"]
        whh = params[f"w_hh_l{l}"]
        b = params[f"b_ih_l{l}"] + params[f"b_hh_l{l}"]
        h = h0[l]
        outs = []
        for t in range(T):
            h = jnp.tanh(layer_in[:, t] @ wih.T + h @ whh.T + b)
            outs.append(h)
        layer_in = jnp.stack(outs, axis=1)
        h_finals.append(h)
    out = jnp.maximum(layer_in[:, -1], 0.0) @ params["w_fc"].T + params["b_fc"]
    return out, jnp.stack(h_finals, axis=0)


# ------------------------------- main -----------------------------------------
if __name__ == "__main__":
    key = jax.random.PRNGKey(0)
    keys = jax.random.split(key, 16)
    k = iter(keys)

    # Deterministic parameter init (mimics nn.RNN / nn.Linear uniform(-1/sqrt(H), 1/sqrt(H)))
    bound = 1.0 / np.sqrt(HIDDEN_DIM)
    params = {}
    for l in range(N_LAYERS):
        din = INPUT_DIM if l == 0 else HIDDEN_DIM
        params[f"w_ih_l{l}"] = jax.random.uniform(next(k), (HIDDEN_DIM, din),
                                                  jnp.float32, -bound, bound)
        params[f"w_hh_l{l}"] = jax.random.uniform(next(k), (HIDDEN_DIM, HIDDEN_DIM),
                                                  jnp.float32, -bound, bound)
        params[f"b_ih_l{l}"] = jax.random.uniform(next(k), (HIDDEN_DIM,),
                                                  jnp.float32, -bound, bound)
        params[f"b_hh_l{l}"] = jax.random.uniform(next(k), (HIDDEN_DIM,),
                                                  jnp.float32, -bound, bound)
    params["w_fc"] = jax.random.uniform(next(k), (OUTPUT_DIM, HIDDEN_DIM),
                                        jnp.float32, -bound, bound)
    params["b_fc"] = jax.random.uniform(next(k), (OUTPUT_DIM,),
                                        jnp.float32, -bound, bound)

    # Inputs (batch_first like PyTorch) and zero-initialized hidden (init_hidden)
    x = jax.random.normal(next(k), (BATCH, SEQ, INPUT_DIM), jnp.float32)
    h0 = jnp.zeros((N_LAYERS, BATCH, HIDDEN_DIM), jnp.float32)

    # Precompute transposed weights / fused biases once (outside the forward).
    prepared = prepare_params(params, N_LAYERS)

    out, h = rnn_net_forward_jit(x, h0, prepared)
    out = jax.block_until_ready(out)
    h = jax.block_until_ready(h)

    # Correctness check against pure-JAX reference
    out_ref, h_ref = rnn_net_reference(x, h0, params)
    np.testing.assert_allclose(np.asarray(out), np.asarray(out_ref), rtol=1e-3, atol=1e-3)
    np.testing.assert_allclose(np.asarray(h), np.asarray(h_ref), rtol=1e-3, atol=1e-3)

    print("KERNEL_OK")
</pallas_src>

<mosaic_0001>
module attributes {stable_mosaic.version = 11 : i64} {
  func.func @kernel(%arg0: memref<32x2xf32, #tpu.memory_space<vmem>>, %arg1: memref<2x4x20xf32, #tpu.memory_space<vmem>>, %arg2: memref<2x20xf32, #tpu.memory_space<vmem>>, %arg3: memref<20x20xf32, #tpu.memory_space<vmem>>, %arg4: memref<1x20xf32, #tpu.memory_space<vmem>>, %arg5: memref<20x20xf32, #tpu.memory_space<vmem>>, %arg6: memref<20x20xf32, #tpu.memory_space<vmem>>, %arg7: memref<1x20xf32, #tpu.memory_space<vmem>>, %arg8: memref<1x20xf32, #tpu.memory_space<vmem>>, %arg9: memref<1x1xf32, #tpu.memory_space<vmem>>, %arg10: memref<4x1xf32, #tpu.memory_space<vmem>>, %arg11: memref<2x4x20xf32, #tpu.memory_space<vmem>>) attributes {dimension_semantics = [], scalar_prefetch = 0 : i64, scratch_operands = 0 : i64, tpu.core_type = #tpu.core_type<tc>} {
    %c0 = arith.constant 0 : index
    %c0_0 = arith.constant 0 : index
    %0 = vector.load %arg2[%c0, %c0_0] : memref<2x20xf32, #tpu.memory_space<vmem>>, vector<2x20xf32>
    %c0_1 = arith.constant 0 : index
    %c0_2 = arith.constant 0 : index
    %1 = vector.load %arg3[%c0_1, %c0_2] : memref<20x20xf32, #tpu.memory_space<vmem>>, vector<20x20xf32>
    %c0_3 = arith.constant 0 : index
    %c0_4 = arith.constant 0 : index
    %2 = vector.load %arg4[%c0_3, %c0_4] : memref<1x20xf32, #tpu.memory_space<vmem>>, vector<1x20xf32>
    %c0_5 = arith.constant 0 : index
    %c0_6 = arith.constant 0 : index
    %3 = vector.load %arg0[%c0_5, %c0_6] : memref<32x2xf32, #tpu.memory_space<vmem>>, vector<32x2xf32>
    %cst = arith.constant dense<0.000000e+00> : vector<32x20xf32>
    %4 = tpu.matmul %3, %0, %cst {dimension_numbers = #tpu.dot_dimension_numbers<[1], [0], [0], [1], [0, 0, 1, 1], [], []>} : vector<32x2xf32>, vector<2x20xf32>, vector<32x20xf32> -> vector<32x20xf32>
    %5 = vector.broadcast %2 : vector<1x20xf32> to vector<32x20xf32>
    %6 = arith.addf %4, %5 : vector<32x20xf32>
    %c0_7 = arith.constant 0 : index
    %c0_8 = arith.constant 0 : index
    %c0_9 = arith.constant 0 : index
    %7 = vector.load %arg1[%c0_7, %c0_8, %c0_9] : memref<2x4x20xf32, #tpu.memory_space<vmem>>, vector<1x4x20xf32>
    %8 = vector.shape_cast %7 : vector<1x4x20xf32> to vector<4x20xf32>
    %9 = vector.extract_strided_slice %6 {offsets = [0, 0], sizes = [4, 20], strides = [1, 1]} : vector<32x20xf32> to vector<4x20xf32>
    %cst_10 = arith.constant dense<0.000000e+00> : vector<4x20xf32>
    %10 = tpu.matmul %8, %1, %cst_10 {dimension_numbers = #tpu.dot_dimension_numbers<[1], [0], [0], [1], [0, 0, 1, 1], [], []>} : vector<4x20xf32>, vector<20x20xf32>, vector<4x20xf32> -> vector<4x20xf32>
    %11 = arith.addf %9, %10 : vector<4x20xf32>
    %12 = math.tanh %11 : vector<4x20xf32>
    %13 = vector.extract_strided_slice %6 {offsets = [4, 0], sizes = [4, 20], strides = [1, 1]} : vector<32x20xf32> to vector<4x20xf32>
    %cst_11 = arith.constant dense<0.000000e+00> : vector<4x20xf32>
    %14 = tpu.matmul %12, %1, %cst_11 {dimension_numbers = #tpu.dot_dimension_numbers<[1], [0], [0], [1], [0, 0, 1, 1], [], []>} : vector<4x20xf32>, vector<20x20xf32>, vector<4x20xf32> -> vector<4x20xf32>
    %15 = arith.addf %13, %14 : vector<4x20xf32>
    %16 = math.tanh %15 : vector<4x20xf32>
    %17 = vector.extract_strided_slice %6 {offsets = [8, 0], sizes = [4, 20], strides = [1, 1]} : vector<32x20xf32> to vector<4x20xf32>
    %cst_12 = arith.constant dense<0.000000e+00> : vector<4x20xf32>
    %18 = tpu.matmul %16, %1, %cst_12 {dimension_numbers = #tpu.dot_dimension_numbers<[1], [0], [0], [1], [0, 0, 1, 1], [], []>} : vector<4x20xf32>, vector<20x20xf32>, vector<4x20xf32> -> vector<4x20xf32>
    %19 = arith.addf %17, %18 : vector<4x20xf32>
    %20 = math.tanh %19 : vector<4x20xf32>
    %21 = vector.extract_strided_slice %6 {offsets = [12, 0], sizes = [4, 20], strides = [1, 1]} : vector<32x20xf32> to vector<4x20xf32>
    %cst_13 = arith.constant dense<0.000000e+00> : vector<4x20xf32>
    %22 = tpu.matmul %20, %1, %cst_13 {dimension_numbers = #tpu.dot_dimension_numbers<[1], [0], [0], [1], [0, 0, 1, 1], [], []>} : vector<4x20xf32>, vector<20x20xf32>, vector<4x20xf32> -> vector<4x20xf32>
    %23 = arith.addf %21, %22 : vector<4x20xf32>
    %24 = math.tanh %23 : vector<4x20xf32>
    %25 = vector.extract_strided_slice %6 {offsets = [16, 0], sizes = [4, 20], strides = [1, 1]} : vector<32x20xf32> to vector<4x20xf32>
    %cst_14 = arith.constant dense<0.000000e+00> : vector<4x20xf32>
    %26 = tpu.matmul %24, %1, %cst_14 {dimension_numbers = #tpu.dot_dimension_numbers<[1], [0], [0], [1], [0, 0, 1, 1], [], []>} : vector<4x20xf32>, vector<20x20xf32>, vector<4x20xf32> -> vector<4x20xf32>
    %27 = arith.addf %25, %26 : vector<4x20xf32>
    %28 = math.tanh %27 : vector<4x20xf32>
    %29 = vector.extract_strided_slice %6 {offsets = [20, 0], sizes = [4, 20], strides = [1, 1]} : vector<32x20xf32> to vector<4x20xf32>
    %cst_15 = arith.constant dense<0.000000e+00> : vector<4x20xf32>
    %30 = tpu.matmul %28, %1, %cst_15 {dimension_numbers = #tpu.dot_dimension_numbers<[1], [0], [0], [1], [0, 0, 1, 1], [], []>} : vector<4x20xf32>, vector<20x20xf32>, vector<4x20xf32> -> vector<4x20xf32>
    %31 = arith.addf %29, %30 : vector<4x20xf32>
    %32 = math.tanh %31 : vector<4x20xf32>
    %33 = vector.extract_strided_slice %6 {offsets = [24, 0], sizes = [4, 20], strides = [1, 1]} : vector<32x20xf32> to vector<4x20xf32>
    %cst_16 = arith.constant dense<0.000000e+00> : vector<4x20xf32>
    %34 = tpu.matmul %32, %1, %cst_16 {dimension_numbers = #tpu.dot_dimension_numbers<[1], [0], [0], [1], [0, 0, 1, 1], [], []>} : vector<4x20xf32>, vector<20x20xf32>, vector<4x20xf32> -> vector<4x20xf32>
    %35 = arith.addf %33, %34 : vector<4x20xf32>
    %36 = math.tanh %35 : vector<4x20xf32>
    %37 = vector.extract_strided_slice %6 {offsets = [28, 0], sizes = [4, 20], strides = [1, 1]} : vector<32x20xf32> to vector<4x20xf32>
    %cst_17 = arith.constant dense<0.000000e+00> : vector<4x20xf32>
    %38 = tpu.matmul %36, %1, %cst_17 {dimension_numbers = #tpu.dot_dimension_numbers<[1], [0], [0], [1], [0, 0, 1, 1], [], []>} : vector<4x20xf32>, vector<20x20xf32>, vector<4x20xf32> -> vector<4x20xf32>
    %39 = arith.addf %37, %38 : vector<4x20xf32>
    %40 = math.tanh %39 : vector<4x20xf32>
    %c0_18 = arith.constant 0 : index
    %c0_19 = arith.constant 0 : index
    %c0_20 = arith.constant 0 : index
    %41 = vector.load %arg11[%c0_18, %c0_19, %c0_20] : memref<2x4x20xf32, #tpu.memory_space<vmem>>, vector<1x4x20xf32>
    %42 = vector.shape_cast %41 : vector<1x4x20xf32> to vector<4x20xf32>
    %43 = vector.shape_cast %40 : vector<4x20xf32> to vector<1x4x20xf32>
    tpu.vector_store %arg11[%c0_18, %c0_19, %c0_20], %43 {strides = array<i32>} : memref<2x4x20xf32, #tpu.memory_space<vmem>>, vector<1x4x20xf32>,
    %c0_21 = arith.constant 0 : index
    %c0_22 = arith.constant 0 : index
    %44 = vector.load %arg5[%c0_21, %c0_22] : memref<20x20xf32, #tpu.memory_space<vmem>>, vector<20x20xf32>
    %c0_23 = arith.constant 0 : index
    %c0_24 = arith.constant 0 : index
    %45 = vector.load %arg6[%c0_23, %c0_24] : memref<20x20xf32, #tpu.memory_space<vmem>>, vector<20x20xf32>
    %c0_25 = arith.constant 0 : index
    %c0_26 = arith.constant 0 : index
    %46 = vector.load %arg7[%c0_25, %c0_26] : memref<1x20xf32, #tpu.memory_space<vmem>>, vector<1x20xf32>
    %47 = vector.shape_cast %46 : vector<1x20xf32> to vector<1x20xf32>
    %48 = vector.broadcast %47 : vector<1x20xf32> to vector<4x20xf32>
    %c1 = arith.constant 1 : index
    %c0_27 = arith.constant 0 : index
    %c0_28 = arith.constant 0 : index
    %49 = vector.load %arg1[%c1, %c0_27, %c0_28] : memref<2x4x20xf32, #tpu.memory_space<vmem>>, vector<1x4x20xf32>
    %50 = vector.shape_cast %49 : vector<1x4x20xf32> to vector<4x20xf32>
    %cst_29 = arith.constant dense<0.000000e+00> : vector<4x20xf32>
    %51 = tpu.matmul %12, %44, %cst_29 {dimension_numbers = #tpu.dot_dimension_numbers<[1], [0], [0], [1], [0, 0, 1, 1], [], []>} : vector<4x20xf32>, vector<20x20xf32>, vector<4x20xf32> -> vector<4x20xf32>
    %52 = arith.addf %51, %48 : vector<4x20xf32>
    %cst_30 = arith.constant dense<0.000000e+00> : vector<4x20xf32>
    %53 = tpu.matmul %50, %45, %cst_30 {dimension_numbers = #tpu.dot_dimension_numbers<[1], [0], [0], [1], [0, 0, 1, 1], [], []>} : vector<4x20xf32>, vector<20x20xf32>, vector<4x20xf32> -> vector<4x20xf32>
    %54 = arith.addf %52, %53 : vector<4x20xf32>
    %55 = math.tanh %54 : vector<4x20xf32>
    %cst_31 = arith.constant dense<0.000000e+00> : vector<4x20xf32>
    %56 = tpu.matmul %16, %44, %cst_31 {dimension_numbers = #tpu.dot_dimension_numbers<[1], [0], [0], [1], [0, 0, 1, 1], [], []>} : vector<4x20xf32>, vector<20x20xf32>, vector<4x20xf32> -> vector<4x20xf32>
    %57 = arith.addf %56, %48 : vector<4x20xf32>
    %cst_32 = arith.constant dense<0.000000e+00> : vector<4x20xf32>
    %58 = tpu.matmul %55, %45, %cst_32 {dimension_numbers = #tpu.dot_dimension_numbers<[1], [0], [0], [1], [0, 0, 1, 1], [], []>} : vector<4x20xf32>, vector<20x20xf32>, vector<4x20xf32> -> vector<4x20xf32>
    %59 = arith.addf %57, %58 : vector<4x20xf32>
    %60 = math.tanh %59 : vector<4x20xf32>
    %cst_33 = arith.constant dense<0.000000e+00> : vector<4x20xf32>
    %61 = tpu.matmul %20, %44, %cst_33 {dimension_numbers = #tpu.dot_dimension_numbers<[1], [0], [0], [1], [0, 0, 1, 1], [], []>} : vector<4x20xf32>, vector<20x20xf32>, vector<4x20xf32> -> vector<4x20xf32>
    %62 = arith.addf %61, %48 : vector<4x20xf32>
    %cst_34 = arith.constant dense<0.000000e+00> : vector<4x20xf32>
    %63 = tpu.matmul %60, %45, %cst_34 {dimension_numbers = #tpu.dot_dimension_numbers<[1], [0], [0], [1], [0, 0, 1, 1], [], []>} : vector<4x20xf32>, vector<20x20xf32>, vector<4x20xf32> -> vector<4x20xf32>
    %64 = arith.addf %62, %63 : vector<4x20xf32>
    %65 = math.tanh %64 : vector<4x20xf32>
    %cst_35 = arith.constant dense<0.000000e+00> : vector<4x20xf32>
    %66 = tpu.matmul %24, %44, %cst_35 {dimension_numbers = #tpu.dot_dimension_numbers<[1], [0], [0], [1], [0, 0, 1, 1], [], []>} : vector<4x20xf32>, vector<20x20xf32>, vector<4x20xf32> -> vector<4x20xf32>
    %67 = arith.addf %66, %48 : vector<4x20xf32>
    %cst_36 = arith.constant dense<0.000000e+00> : vector<4x20xf32>
    %68 = tpu.matmul %65, %45, %cst_36 {dimension_numbers = #tpu.dot_dimension_numbers<[1], [0], [0], [1], [0, 0, 1, 1], [], []>} : vector<4x20xf32>, vector<20x20xf32>, vector<4x20xf32> -> vector<4x20xf32>
    %69 = arith.addf %67, %68 : vector<4x20xf32>
    %70 = math.tanh %69 : vector<4x20xf32>
    %cst_37 = arith.constant dense<0.000000e+00> : vector<4x20xf32>
    %71 = tpu.matmul %28, %44, %cst_37 {dimension_numbers = #tpu.dot_dimension_numbers<[1], [0], [0], [1], [0, 0, 1, 1], [], []>} : vector<4x20xf32>, vector<20x20xf32>, vector<4x20xf32> -> vector<4x20xf32>
    %72 = arith.addf %71, %48 : vector<4x20xf32>
    %cst_38 = arith.constant dense<0.000000e+00> : vector<4x20xf32>
    %73 = tpu.matmul %70, %45, %cst_38 {dimension_numbers = #tpu.dot_dimension_numbers<[1], [0], [0], [1], [0, 0, 1, 1], [], []>} : vector<4x20xf32>, vector<20x20xf32>, vector<4x20xf32> -> vector<4x20xf32>
    %74 = arith.addf %72, %73 : vector<4x20xf32>
    %75 = math.tanh %74 : vector<4x20xf32>
    %cst_39 = arith.constant dense<0.000000e+00> : vector<4x20xf32>
    %76 = tpu.matmul %32, %44, %cst_39 {dimension_numbers = #tpu.dot_dimension_numbers<[1], [0], [0], [1], [0, 0, 1, 1], [], []>} : vector<4x20xf32>, vector<20x20xf32>, vector<4x20xf32> -> vector<4x20xf32>
    %77 = arith.addf %76, %48 : vector<4x20xf32>
    %cst_40 = arith.constant dense<0.000000e+00> : vector<4x20xf32>
    %78 = tpu.matmul %75, %45, %cst_40 {dimension_numbers = #tpu.dot_dimension_numbers<[1], [0], [0], [1], [0, 0, 1, 1], [], []>} : vector<4x20xf32>, vector<20x20xf32>, vector<4x20xf32> -> vector<4x20xf32>
    %79 = arith.addf %77, %78 : vector<4x20xf32>
    %80 = math.tanh %79 : vector<4x20xf32>
    %cst_41 = arith.constant dense<0.000000e+00> : vector<4x20xf32>
    %81 = tpu.matmul %36, %44, %cst_41 {dimension_numbers = #tpu.dot_dimension_numbers<[1], [0], [0], [1], [0, 0, 1, 1], [], []>} : vector<4x20xf32>, vector<20x20xf32>, vector<4x20xf32> -> vector<4x20xf32>
    %82 = arith.addf %81, %48 : vector<4x20xf32>
    %cst_42 = arith.constant dense<0.000000e+00> : vector<4x20xf32>
    %83 = tpu.matmul %80, %45, %cst_42 {dimension_numbers = #tpu.dot_dimension_numbers<[1], [0], [0], [1], [0, 0, 1, 1], [], []>} : vector<4x20xf32>, vector<20x20xf32>, vector<4x20xf32> -> vector<4x20xf32>
    %84 = arith.addf %82, %83 : vector<4x20xf32>
    %85 = math.tanh %84 : vector<4x20xf32>
    %cst_43 = arith.constant dense<0.000000e+00> : vector<4x20xf32>
    %86 = tpu.matmul %40, %44, %cst_43 {dimension_numbers = #tpu.dot_dimension_numbers<[1], [0], [0], [1], [0, 0, 1, 1], [], []>} : vector<4x20xf32>, vector<20x20xf32>, vector<4x20xf32> -> vector<4x20xf32>
    %87 = arith.addf %86, %48 : vector<4x20xf32>
    %cst_44 = arith.constant dense<0.000000e+00> : vector<4x20xf32>
    %88 = tpu.matmul %85, %45, %cst_44 {dimension_numbers = #tpu.dot_dimension_numbers<[1], [0], [0], [1], [0, 0, 1, 1], [], []>} : vector<4x20xf32>, vector<20x20xf32>, vector<4x20xf32> -> vector<4x20xf32>
    %89 = arith.addf %87, %88 : vector<4x20xf32>
    %90 = math.tanh %89 : vector<4x20xf32>
    %c1_45 = arith.constant 1 : index
    %c0_46 = arith.constant 0 : index
    %c0_47 = arith.constant 0 : index
    %91 = vector.load %arg11[%c1_45, %c0_46, %c0_47] : memref<2x4x20xf32, #tpu.memory_space<vmem>>, vector<1x4x20xf32>
    %92 = vector.shape_cast %91 : vector<1x4x20xf32> to vector<4x20xf32>
    %93 = vector.shape_cast %90 : vector<4x20xf32> to vector<1x4x20xf32>
    tpu.vector_store %arg11[%c1_45, %c0_46, %c0_47], %93 {strides = array<i32>} : memref<2x4x20xf32, #tpu.memory_space<vmem>>, vector<1x4x20xf32>,
    %cst_48 = arith.constant 0.000000e+00 : f32
    %94 = vector.broadcast %cst_48 : f32 to vector<4x20xf32>
    %95 = arith.maximumf %90, %94 : vector<4x20xf32>
    %c0_49 = arith.constant 0 : index
    %c0_50 = arith.constant 0 : index
    %96 = vector.load %arg8[%c0_49, %c0_50] : memref<1x20xf32, #tpu.memory_space<vmem>>, vector<1x20xf32>
    %97 = vector.broadcast %96 : vector<1x20xf32> to vector<4x20xf32>
    %98 = arith.mulf %95, %97 : vector<4x20xf32>
    %cst_51 = arith.constant dense<0.000000e+00> : vector<4xf32>
    %99 = vector.multi_reduction <add>, %98, %cst_51 [1] : vector<4x20xf32> to vector<4xf32>
    %100 = vector.shape_cast %99 : vector<4xf32> to vector<4x1xf32>
    %c0_52 = arith.constant 0 : index
    %c0_53 = arith.constant 0 : index
    %101 = vector.load %arg9[%c0_52, %c0_53] : memref<1x1xf32, #tpu.memory_space<vmem>>, vector<1x1xf32>
    %102 = vector.broadcast %101 : vector<1x1xf32> to vector<4x1xf32>
    %103 = arith.addf %100, %102 : vector<4x1xf32>
    %c0_54 = arith.constant 0 : index
    %c0_55 = arith.constant 0 : index
    %104 = vector.load %arg10[%c0_54, %c0_55] : memref<4x1xf32, #tpu.memory_space<vmem>>, vector<4x1xf32>
    tpu.vector_store %arg10[%c0_54, %c0_55], %103 {strides = array<i32>} : memref<4x1xf32, #tpu.memory_space<vmem>>, vector<4x1xf32>,
    return
  }
}

</mosaic_0001>

<llo_original>
// kernel: rnn_net_forward.1
$region0: #{rnn_net_forward.1}
  #allocation0 [shape = 'u32[]', space=smem, size = 0x4, offset = 0x4, fixed_abs, tag = 'smem constant byte address 0x4 - core index']
  #allocation1 [shape = 'u32[72,128]{1,0:T(1,128)}', space=vmem, size = 0x9000, scoped, tag = 'internal scratch']
  #allocation2 [shape = 'f32[1,1]{1,0:T(1,128)S(1)}', space=vmem, size = 0x200, scoped, tag = 'scoped memory for rnn_net_forward.1']
  %s0 = inlined_call_operand.vmem [shape: f32[32,2], index: 0, kind: input, shape index: {}]
  %s1 = inlined_call_operand.hbm [shape: f32[2,4,20], index: 1, kind: input, shape index: {}]
  %s2 = inlined_call_operand.hbm [shape: f32[2,20], index: 2, kind: input, shape index: {}]
  %s3 = inlined_call_operand.vmem [shape: f32[20,20], index: 3, kind: input, shape index: {}]
  %s4 = inlined_call_operand.hbm [shape: f32[1,20], index: 4, kind: input, shape index: {}]
  %s5 = inlined_call_operand.vmem [shape: f32[20,20], index: 5, kind: input, shape index: {}]
  %s6 = inlined_call_operand.hbm [shape: f32[20,20], index: 6, kind: input, shape index: {}]
  %s7 = inlined_call_operand.vmem [shape: f32[1,20], index: 7, kind: input, shape index: {}]
  %s8 = inlined_call_operand.vmem [shape: f32[1,20], index: 8, kind: input, shape index: {}]
  %s9 = inlined_call_operand.<no memory space> [shape: f32[1,1], index: 9, kind: input, shape index: {}]
  %s10 = inlined_call_operand.vmem [shape: f32[4,1], index: 10, kind: output, shape index: {0}]
  %s11 = inlined_call_operand.hbm [shape: f32[2,4,20], index: 11, kind: output, shape index: {1}]
  %12 = xla_tuple %s10, %s11
  %s13 = sld [smem:[#allocation0]]
  $region74: #{rnn_net_forward.1} parent=0
    _
  %s15 = ssub.s32 1, %s13
  %s16 = scalar_select 0, %s15, %s13
  %v17 = vstv %s9
  %18 = vst [vmem:[#allocation2] sm:$0x1] %v17
  $region1: #{rnn_net_forward.1} parent=0
    #allocation3 [shape = 'u8[4096]{0}', space=vmem, size = 0x1000, scoped, tag = 'input window, operand 1, single buffered']
    #allocation4 [shape = 's32[1]{0}', space=sflag, size = 0x4, scoped, tag = 'scoped memory for rnn_net_forward.1']
    #allocation5 [shape = 's32[1]{0}', space=sflag, size = 0x4, scoped, tag = 'scoped memory for rnn_net_forward.1']
    #allocation6 [shape = 'u8[1024]{0}', space=vmem, size = 0x400, scoped, tag = 'input window, operand 2, single buffered']
    #allocation7 [shape = 's32[1]{0}', space=sflag, size = 0x4, scoped, tag = 'scoped memory for rnn_net_forward.1']
    #allocation8 [shape = 'u8[512]{0}', space=vmem, size = 0x400, scoped, tag = 'input window, operand 4, single buffered']
    #allocation9 [shape = 'u8[12288]{0}', space=vmem, size = 0x3000, scoped, tag = 'input window, operand 6, single buffered']
    #allocation10 [shape = 's32[1]{0}', space=sflag, size = 0x4, scoped, tag = 'scoped memory for rnn_net_forward.1']
    #allocation11 [shape = 'u8[4096]{0}', space=vmem, size = 0x1000, scoped, tag = 'output window, operand 1, single buffered']
    %19 = vsyncpa [#allocation4], 0
    %20 = vsyncpa [#allocation7], 0
    %21 = vsyncpa [#allocation10], 0
    %22 = vsyncpa [#allocation5], 0
    // Predicated region
    $region2: #{rnn_net_forward.1} parent=1 // pred_check
      _
    $region3: #{rnn_net_forward.1} parent=1 // pred_check_branch
      %24 = sbr.rel (0) target = $region5
    $region4: #{rnn_net_forward.1} parent=1 // pred_region
      _
    $region5: #{rnn_net_forward.1} parent=1 // pred_fallthru
      _
    // Predicated region
    $region6: #{rnn_net_forward.1} parent=1 // pred_check
      _
    $region7: #{rnn_net_forward.1} parent=1 // pred_check_branch
      %26 = sbr.rel (0) target = $region9
    $region8: #{rnn_net_forward.1} parent=1 // pred_region
      %28 = vsyncadd [#allocation4], 0
      %s29 = sshll.u32 %s1, 4
      %s30 = int_to_ptr.hbm [resolvable:$true] %s29
      %s31 = sshll.u32 [#allocation3], 4
      %s32 = int_to_ptr.vmem [resolvable:$true] %s31
      %37 = dma.hbm_to_vmem [thread:$0]  %s30, 128, %s32, [#allocation4], 64, 64, 4
    $region9: #{rnn_net_forward.1} parent=1 // pred_fallthru
      _
    // Predicated region
    $region10: #{rnn_net_forward.1} parent=1 // pred_check
      _
    $region11: #{rnn_net_forward.1} parent=1 // pred_check_branch
      %39 = sbr.rel (0) target = $region13
    $region12: #{rnn_net_forward.1} parent=1 // pred_region
      %41 = vsyncadd [#allocation7], 0
      %s43 = sshll.u32 %s2, 4
      %s44 = int_to_ptr.hbm [resolvable:$true] %s43
      %s45 = sshll.u32 [#allocation6], 4
      %s46 = int_to_ptr.vmem [resolvable:$true] %s45
      %48 = dma.hbm_to_vmem [thread:$0]  %s44, 32, %s46, [#allocation7]
    $region13: #{rnn_net_forward.1} parent=1 // pred_fallthru
      _
    // Predicated region
    $region14: #{rnn_net_forward.1} parent=1 // pred_check
      _
    $region15: #{rnn_net_forward.1} parent=1 // pred_check_branch
      %50 = sbr.rel (0) target = $region17
    $region16: #{rnn_net_forward.1} parent=1 // pred_region
      _
    $region17: #{rnn_net_forward.1} parent=1 // pred_fallthru
      _
    // Predicated region
    $region18: #{rnn_net_forward.1} parent=1 // pred_check
      _
    $region19: #{rnn_net_forward.1} parent=1 // pred_check_branch
      %52 = sbr.rel (0) target = $region21
    $region20: #{rnn_net_forward.1} parent=1 // pred_region
      %54 = vsyncadd [#allocation7], 0
      %s56 = sshll.u32 %s4, 4
      %s57 = int_to_ptr.hbm [resolvable:$true] %s56
      %s58 = sshll.u32 [#allocation8], 4
      %s59 = int_to_ptr.vmem [resolvable:$true] %s58
      %61 = dma.hbm_to_vmem [thread:$0]  %s57, 16, %s59, [#allocation7]
    $region21: #{rnn_net_forward.1} parent=1 // pred_fallthru
      _
    // Predicated region
    $region22: #{rnn_net_forward.1} parent=1 // pred_check
      _
    $region23: #{rnn_net_forward.1} parent=1 // pred_check_branch
      %63 = sbr.rel (0) target = $region25
    $region24: #{rnn_net_forward.1} parent=1 // pred_region
      _
    $region25: #{rnn_net_forward.1} parent=1 // pred_fallthru
      _
    // Predicated region
    $region26: #{rnn_net_forward.1} parent=1 // pred_check
      _
    $region27: #{rnn_net_forward.1} parent=1 // pred_check_branch
      %65 = sbr.rel (0) target = $region29
    $region28: #{rnn_net_forward.1} parent=1 // pred_region
      %67 = vsyncadd [#allocation10], 0
      %s68 = sshll.u32 %s6, 4
      %s69 = int_to_ptr.hbm [resolvable:$true] %s68
      %s70 = sshll.u32 [#allocation9], 4
      %s71 = int_to_ptr.vmem [resolvable:$true] %s70
      %76 = dma.hbm_to_vmem [thread:$0]  %s69, 384, %s71, [#allocation10], 128, 128, 8
    $region29: #{rnn_net_forward.1} parent=1 // pred_fallthru
      _
    // Predicated region
    $region30: #{rnn_net_forward.1} parent=1 // pred_check
      _
    $region31: #{rnn_net_forward.1} parent=1 // pred_check_branch
      %78 = sbr.rel (0) target = $region33
    $region32: #{rnn_net_forward.1} parent=1 // pred_region
      _
    $region33: #{rnn_net_forward.1} parent=1 // pred_fallthru
      _
    // Predicated region
    $region34: #{rnn_net_forward.1} parent=1 // pred_check
      _
    $region35: #{rnn_net_forward.1} parent=1 // pred_check_branch
      %80 = sbr.rel (0) target = $region37
    $region36: #{rnn_net_forward.1} parent=1 // pred_region
      _
    $region37: #{rnn_net_forward.1} parent=1 // pred_fallthru
      _
    // Predicated region
    $region38: #{rnn_net_forward.1} parent=1 // pred_check
      _
    $region39: #{rnn_net_forward.1} parent=1 // pred_check_branch
      %82 = sbr.rel (0) target = $region41
    $region40: #{rnn_net_forward.1} parent=1 // pred_region
      _
    $region41: #{rnn_net_forward.1} parent=1 // pred_fallthru
      _
    // Predicated region
    $region42: #{rnn_net_forward.1} parent=1 // pred_check
      _
    $region43: #{rnn_net_forward.1} parent=1 // pred_check_branch
      %84 = sbr.rel (0) target = $region45
    $region44: #{rnn_net_forward.1} parent=1 // pred_region
      %86 = dma.done [#allocation4], 128
    $region45: #{rnn_net_forward.1} parent=1 // pred_fallthru
      _
    // Predicated region
    $region46: #{rnn_net_forward.1} parent=1 // pred_check
      _
    $region47: #{rnn_net_forward.1} parent=1 // pred_check_branch
      %88 = sbr.rel (0) target = $region49
    $region48: #{rnn_net_forward.1} parent=1 // pred_region
      %90 = dma.done [#allocation7], 32
    $region49: #{rnn_net_forward.1} parent=1 // pred_fallthru
      _
    // Predicated region
    $region50: #{rnn_net_forward.1} parent=1 // pred_check
      _
    $region51: #{rnn_net_forward.1} parent=1 // pred_check_branch
      %92 = sbr.rel (0) target = $region53
    $region52: #{rnn_net_forward.1} parent=1 // pred_region
      %94 = dma.done [#allocation7], 16
    $region53: #{rnn_net_forward.1} parent=1 // pred_fallthru
      _
    // Predicated region
    $region54: #{rnn_net_forward.1} parent=1 // pred_check
      _
    $region55: #{rnn_net_forward.1} parent=1 // pred_check_branch
      %96 = sbr.rel (0) target = $region57
    $region56: #{rnn_net_forward.1} parent=1 // pred_region
      %98 = dma.done [#allocation10], 384
    $region57: #{rnn_net_forward.1} parent=1 // pred_fallthru
      _
    %v99 = vld [vmem:[#allocation6] sm:$0x3]
    %v100 = vld [vmem:[%s3] sm:$0xff]
    %v101 = vld [vmem:[%s3 + $0x8] sm:$0xff]
    %v102 = vld [vmem:[%s3 + $0x10] sm:$0xf]
    %v103 = vld [vmem:[#allocation8] sm:$0x1]
    %v104 = vld [vmem:[%s0] sm:$0xff]
    %v105 = vld [vmem:[%s0 + $0x8] sm:$0xff]
    %v106 = vld [vmem:[%s0 + $0x10] sm:$0xff]
    %v107 = vld [vmem:[%s0 + $0x18] sm:$0xff]
    %v109 = vperm.slane %v103, 0
    %vm111 = vcmask 15360
    %v113 = vsel %vm111, %v104, 0
    %v116 = vsel %vm111, %v105, 0
    %v119 = vsel %vm111, %v106, 0
    %v122 = vsel %vm111, %v107, 0
    %vm124 = vcmask 1041408
    %v126 = vsel %vm124, %v99, 0
    %128 = vmatpush.msra.mxu0 0.0
    %129 = vmatpush.msra.mxu0 0.0
    %130 = vmatpush.msra.mxu0 0.0
    %131 = vmatpush.msra.mxu0 0.0
    %132 = vmatpush.msra.mxu0 0.0
    %133 = vmatpush.msra.mxu0 0.0
    %134 = vmatpush.msra.mxu0 0.0
    %135 = vmatpush.msra.mxu0 0.0
    %136 = vmatpush.msra.mxu0 0.0
    %137 = vmatpush.msra.mxu0 0.0
    %138 = vmatpush.msra.mxu0 0.0
    %139 = vmatpush.msra.mxu0 0.0
    %140 = vmatpush.msra.mxu0 0.0
    %141 = vmatpush.msra.mxu0 0.0
    %142 = vmatpush.msra.mxu0 0.0
    %143 = vmatpush.msra.mxu0 %v126
    %144 = vmatmul.f32.gmra.mxu0 %v113
    %v145 = vpop.f32.mrf.mxu0
    %v146 = vadd.f32 %v109, %v145
    %147 = vmatmul.f32.gmra.mxu0 %v116
    %v148 = vpop.f32.mrf.mxu0
    %v149 = vadd.f32 %v109, %v148
    %150 = vmatmul.f32.gmra.mxu0 %v119
    %v151 = vpop.f32.mrf.mxu0
    %v152 = vadd.f32 %v109, %v151
    %153 = vmatmul.f32.gmra.mxu0 %v122
    %v154 = vpop.f32.mrf.mxu0
    %v155 = vadd.f32 %v109, %v154
    %156 = vdwg.mxu0
    %v157 = vld [vmem:[#allocation3] sm:$0xf]
    %vm158 = vcmask 162816
    %v160 = vsel %vm158, %v157, 0
    %vm162 = vcmask 1043456
    %v164 = vsel %vm162, %v102, 0
    %166 = vmatpush.msra.mxu0 0.0
    %167 = vmatpush.msra.mxu0 0.0
    %168 = vmatpush.msra.mxu0 0.0
    %169 = vmatpush.msra.mxu0 0.0
    %170 = vmatpush.msra.mxu0 0.0
    %171 = vmatpush.msra.mxu0 0.0
    %172 = vmatpush.msra.mxu0 0.0
    %173 = vmatpush.msra.mxu0 0.0
    %174 = vmatpush.msra.mxu0 0.0
    %175 = vmatpush.msra.mxu0 0.0
    %176 = vmatpush.msra.mxu0 0.0
    %177 = vmatpush.msra.mxu0 0.0
    %178 = vmatpush.msra.mxu0 0.0
    %179 = vmatpush.msra.mxu0 %v164
    %180 = vmatpush.msra.mxu0 %v101
    %181 = vmatpush.msra.mxu0 %v100
    %182 = vmatmul.f32.gmra.mxu0 %v160
    %v183 = vpop.f32.mrf.mxu0
    %v184 = vadd.f32 0.0, %v183
    %185 = vdwg.mxu0
    %v186 = vadd.f32 %v146, %v184
    %v187 = vtanh.pop %v186
    %v189 = vsel %vm158, %v187, 0
    %191 = vmatpush.msra.mxu0 0.0
    %192 = vmatpush.msra.mxu0 0.0
    %193 = vmatpush.msra.mxu0 0.0
    %194 = vmatpush.msra.mxu0 0.0
    %195 = vmatpush.msra.mxu0 0.0
    %196 = vmatpush.msra.mxu0 0.0
    %197 = vmatpush.msra.mxu0 0.0
    %198 = vmatpush.msra.mxu0 0.0
    %199 = vmatpush.msra.mxu0 0.0
    %200 = vmatpush.msra.mxu0 0.0
    %201 = vmatpush.msra.mxu0 0.0
    %202 = vmatpush.msra.mxu0 0.0
    %203 = vmatpush.msra.mxu0 0.0
    %204 = vmatpush.msra.mxu0 %v164
    %205 = vmatpush.msra.mxu0 %v101
    %206 = vmatpush.msra.mxu0 %v100
    %207 = vmatmul.f32.gmra.mxu0 %v189
    %v208 = vpop.f32.mrf.mxu0
    %v209 = vadd.f32 0.0, %v208
    %210 = vdwg.mxu0
    %v212 = vrot.slane %v209, 4
    %v214 = vadd.f32 %v146, %v212
    %v215 = vtanh.pop %v214
    %v217 = vrot.slane %v215, 4
    %v218 = vsel %vm158, %v217, 0
    %220 = vmatpush.msra.mxu0 0.0
    %221 = vmatpush.msra.mxu0 0.0
    %222 = vmatpush.msra.mxu0 0.0
    %223 = vmatpush.msra.mxu0 0.0
    %224 = vmatpush.msra.mxu0 0.0
    %225 = vmatpush.msra.mxu0 0.0
    %226 = vmatpush.msra.mxu0 0.0
    %227 = vmatpush.msra.mxu0 0.0
    %228 = vmatpush.msra.mxu0 0.0
    %229 = vmatpush.msra.mxu0 0.0
    %230 = vmatpush.msra.mxu0 0.0
    %231 = vmatpush.msra.mxu0 0.0
    %232 = vmatpush.msra.mxu0 0.0
    %233 = vmatpush.msra.mxu0 %v164
    %234 = vmatpush.msra.mxu0 %v101
    %235 = vmatpush.msra.mxu0 %v100
    %236 = vmatmul.f32.gmra.mxu0 %v218
    %v237 = vpop.f32.mrf.mxu0
    %v238 = vadd.f32 0.0, %v237
    %239 = vdwg.mxu0
    %v240 = vadd.f32 %v149, %v238
    %v241 = vtanh.pop %v240
    %v243 = vsel %vm158, %v241, 0
    %245 = vmatpush.msra.mxu0 0.0
    %246 = vmatpush.msra.mxu0 0.0
    %247 = vmatpush.msra.mxu0 0.0
    %248 = vmatpush.msra.mxu0 0.0
    %249 = vmatpush.msra.mxu0 0.0
    %250 = vmatpush.msra.mxu0 0.0
    %251 = vmatpush.msra.mxu0 0.0
    %252 = vmatpush.msra.mxu0 0.0
    %253 = vmatpush.msra.mxu0 0.0
    %254 = vmatpush.msra.mxu0 0.0
    %255 = vmatpush.msra.mxu0 0.0
    %256 = vmatpush.msra.mxu0 0.0
    %257 = vmatpush.msra.mxu0 0.0
    %258 = vmatpush.msra.mxu0 %v164
    %259 = vmatpush.msra.mxu0 %v101
    %260 = vmatpush.msra.mxu0 %v100
    %261 = vmatmul.f32.gmra.mxu0 %v243
    %v262 = vpop.f32.mrf.mxu0
    %v263 = vadd.f32 0.0, %v262
    %264 = vdwg.mxu0
    %v266 = vrot.slane %v263, 4
    %v268 = vadd.f32 %v149, %v266
    %v269 = vtanh.pop %v268
    %v271 = vrot.slane %v269, 4
    %v272 = vsel %vm158, %v271, 0
    %274 = vmatpush.msra.mxu0 0.0
    %275 = vmatpush.msra.mxu0 0.0
    %276 = vmatpush.msra.mxu0 0.0
    %277 = vmatpush.msra.mxu0 0.0
    %278 = vmatpush.msra.mxu0 0.0
    %279 = vmatpush.msra.mxu0 0.0
    %280 = vmatpush.msra.mxu0 0.0
    %281 = vmatpush.msra.mxu0 0.0
    %282 = vmatpush.msra.mxu0 0.0
    %283 = vmatpush.msra.mxu0 0.0
    %284 = vmatpush.msra.mxu0 0.0
    %285 = vmatpush.msra.mxu0 0.0
    %286 = vmatpush.msra.mxu0 0.0
    %287 = vmatpush.msra.mxu0 %v164
    %288 = vmatpush.msra.mxu0 %v101
    %289 = vmatpush.msra.mxu0 %v100
    %290 = vmatmul.f32.gmra.mxu0 %v272
    %v291 = vpop.f32.mrf.mxu0
    %v292 = vadd.f32 0.0, %v291
    %293 = vdwg.mxu0
    %v294 = vadd.f32 %v152, %v292
    %v295 = vtanh.pop %v294
    %v297 = vsel %vm158, %v295, 0
    %299 = vmatpush.msra.mxu0 0.0
    %300 = vmatpush.msra.mxu0 0.0
    %301 = vmatpush.msra.mxu0 0.0
    %302 = vmatpush.msra.mxu0 0.0
    %303 = vmatpush.msra.mxu0 0.0
    %304 = vmatpush.msra.mxu0 0.0
    %305 = vmatpush.msra.mxu0 0.0
    %306 = vmatpush.msra.mxu0 0.0
    %307 = vmatpush.msra.mxu0 0.0
    %308 = vmatpush.msra.mxu0 0.0
    %309 = vmatpush.msra.mxu0 0.0
    %310 = vmatpush.msra.mxu0 0.0
    %311 = vmatpush.msra.mxu0 0.0
    %312 = vmatpush.msra.mxu0 %v164
    %313 = vmatpush.msra.mxu0 %v101
    %314 = vmatpush.msra.mxu0 %v100
    %315 = vmatmul.f32.gmra.mxu0 %v297
    %v316 = vpop.f32.mrf.mxu0
    %v317 = vadd.f32 0.0, %v316
    %318 = vdwg.mxu0
    %v320 = vrot.slane %v317, 4
    %v322 = vadd.f32 %v152, %v320
    %v323 = vtanh.pop %v322
    %v325 = vrot.slane %v323, 4
    %v326 = vsel %vm158, %v325, 0
    %328 = vmatpush.msra.mxu0 0.0
    %329 = vmatpush.msra.mxu0 0.0
    %330 = vmatpush.msra.mxu0 0.0
    %331 = vmatpush.msra.mxu0 0.0
    %332 = vmatpush.msra.mxu0 0.0
    %333 = vmatpush.msra.mxu0 0.0
    %334 = vmatpush.msra.mxu0 0.0
    %335 = vmatpush.msra.mxu0 0.0
    %336 = vmatpush.msra.mxu0 0.0
    %337 = vmatpush.msra.mxu0 0.0
    %338 = vmatpush.msra.mxu0 0.0
    %339 = vmatpush.msra.mxu0 0.0
    %340 = vmatpush.msra.mxu0 0.0
    %341 = vmatpush.msra.mxu0 %v164
    %342 = vmatpush.msra.mxu0 %v101
    %343 = vmatpush.msra.mxu0 %v100
    %344 = vmatmul.f32.gmra.mxu0 %v326
    %v345 = vpop.f32.mrf.mxu0
    %v346 = vadd.f32 0.0, %v345
    %347 = vdwg.mxu0
    %v348 = vadd.f32 %v155, %v346
    %v349 = vtanh.pop %v348
    %v351 = vsel %vm158, %v349, 0
    %353 = vmatpush.msra.mxu0 0.0
    %354 = vmatpush.msra.mxu0 0.0
    %355 = vmatpush.msra.mxu0 0.0
    %356 = vmatpush.msra.mxu0 0.0
    %357 = vmatpush.msra.mxu0 0.0
    %358 = vmatpush.msra.mxu0 0.0
    %359 = vmatpush.msra.mxu0 0.0
    %360 = vmatpush.msra.mxu0 0.0
    %361 = vmatpush.msra.mxu0 0.0
    %362 = vmatpush.msra.mxu0 0.0
    %363 = vmatpush.msra.mxu0 0.0
    %364 = vmatpush.msra.mxu0 0.0
    %365 = vmatpush.msra.mxu0 0.0
    %366 = vmatpush.msra.mxu0 %v164
    %367 = vmatpush.msra.mxu0 %v101
    %368 = vmatpush.msra.mxu0 %v100
    %369 = vmatmul.f32.gmra.mxu0 %v351
    %v370 = vpop.f32.mrf.mxu0
    %v371 = vadd.f32 0.0, %v370
    %372 = vdwg.mxu0
    %v374 = vrot.slane %v371, 4
    %v376 = vadd.f32 %v155, %v374
    %v377 = vtanh.pop %v376
    %vm378 = vcmask 162820
    %379 = vst.msk [vmem:[#allocation11 - $0x4] sm:$0xf0] %vm378, %v377
    %v380 = vld [vmem:[%s5] sm:$0xff]
    %v381 = vld [vmem:[%s5 + $0x8] sm:$0xff]
    %v382 = vld [vmem:[%s5 + $0x10] sm:$0xf]
    %v383 = vld [vmem:[#allocation9] sm:$0xff]
    %v384 = vld [vmem:[#allocation9 + $0x8] sm:$0xff]
    %v385 = vld [vmem:[#allocation9 + $0x10] sm:$0xf]
    %v386 = vld [vmem:[%s7] sm:$0x1]
    %v388 = vperm.slane %v386, 0
    %s390 = scalar_lea.vmem [#allocation3], 4
    %v391 = vld [vmem:[%s390] sm:$0xf]
    %v393 = vsel %vm162, %v382, 0
    %395 = vmatpush.msra.mxu0 0.0
    %396 = vmatpush.msra.mxu0 0.0
    %397 = vmatpush.msra.mxu0 0.0
    %398 = vmatpush.msra.mxu0 0.0
    %399 = vmatpush.msra.mxu0 0.0
    %400 = vmatpush.msra.mxu0 0.0
    %401 = vmatpush.msra.mxu0 0.0
    %402 = vmatpush.msra.mxu0 0.0
    %403 = vmatpush.msra.mxu0 0.0
    %404 = vmatpush.msra.mxu0 0.0
    %405 = vmatpush.msra.mxu0 0.0
    %406 = vmatpush.msra.mxu0 0.0
    %407 = vmatpush.msra.mxu0 0.0
    %408 = vmatpush.msra.mxu0 %v393
    %409 = vmatpush.msra.mxu0 %v381
    %410 = vmatpush.msra.mxu0 %v380
    %411 = vmatmul.f32.gmra.mxu0 %v189
    %v412 = vpop.f32.mrf.mxu0
    %v413 = vadd.f32 %v388, %v412
    %414 = vdwg.mxu0
    %v416 = vsel %vm158, %v391, 0
    %v419 = vsel %vm162, %v385, 0
    %421 = vmatpush.msra.mxu0 0.0
    %422 = vmatpush.msra.mxu0 0.0
    %423 = vmatpush.msra.mxu0 0.0
    %424 = vmatpush.msra.mxu0 0.0
    %425 = vmatpush.msra.mxu0 0.0
    %426 = vmatpush.msra.mxu0 0.0
    %427 = vmatpush.msra.mxu0 0.0
    %428 = vmatpush.msra.mxu0 0.0
    %429 = vmatpush.msra.mxu0 0.0
    %430 = vmatpush.msra.mxu0 0.0
    %431 = vmatpush.msra.mxu0 0.0
    %432 = vmatpush.msra.mxu0 0.0
    %433 = vmatpush.msra.mxu0 0.0
    %434 = vmatpush.msra.mxu0 %v419
    %435 = vmatpush.msra.mxu0 %v384
    %436 = vmatpush.msra.mxu0 %v383
    %437 = vmatmul.f32.gmra.mxu0 %v416
    %v438 = vpop.f32.mrf.mxu0
    %v439 = vadd.f32 0.0, %v438
    %440 = vdwg.mxu0
    %v441 = vadd.f32 %v413, %v439
    %v442 = vtanh.pop %v441
    %443 = vmatpush.msra.mxu0 0.0
    %444 = vmatpush.msra.mxu0 0.0
    %445 = vmatpush.msra.mxu0 0.0
    %446 = vmatpush.msra.mxu0 0.0
    %447 = vmatpush.msra.mxu0 0.0
    %448 = vmatpush.msra.mxu0 0.0
    %449 = vmatpush.msra.mxu0 0.0
    %450 = vmatpush.msra.mxu0 0.0
    %451 = vmatpush.msra.mxu0 0.0
    %452 = vmatpush.msra.mxu0 0.0
    %453 = vmatpush.msra.mxu0 0.0
    %454 = vmatpush.msra.mxu0 0.0
    %455 = vmatpush.msra.mxu0 0.0
    %456 = vmatpush.msra.mxu0 %v393
    %457 = vmatpush.msra.mxu0 %v381
    %458 = vmatpush.msra.mxu0 %v380
    %459 = vmatmul.f32.gmra.mxu0 %v218
    %v460 = vpop.f32.mrf.mxu0
    %v461 = vadd.f32 %v388, %v460
    %462 = vdwg.mxu0
    %v464 = vsel %vm158, %v442, 0
    %466 = vmatpush.msra.mxu0 0.0
    %467 = vmatpush.msra.mxu0 0.0
    %468 = vmatpush.msra.mxu0 0.0
    %469 = vmatpush.msra.mxu0 0.0
    %470 = vmatpush.msra.mxu0 0.0
    %471 = vmatpush.msra.mxu0 0.0
    %472 = vmatpush.msra.mxu0 0.0
    %473 = vmatpush.msra.mxu0 0.0
    %474 = vmatpush.msra.mxu0 0.0
    %475 = vmatpush.msra.mxu0 0.0
    %476 = vmatpush.msra.mxu0 0.0
    %477 = vmatpush.msra.mxu0 0.0
    %478 = vmatpush.msra.mxu0 0.0
    %479 = vmatpush.msra.mxu0 %v419
    %480 = vmatpush.msra.mxu0 %v384
    %481 = vmatpush.msra.mxu0 %v383
    %482 = vmatmul.f32.gmra.mxu0 %v464
    %v483 = vpop.f32.mrf.mxu0
    %v484 = vadd.f32 0.0, %v483
    %485 = vdwg.mxu0
    %v486 = vadd.f32 %v461, %v484
    %v487 = vtanh.pop %v486
    %488 = vmatpush.msra.mxu0 0.0
    %489 = vmatpush.msra.mxu0 0.0
    %490 = vmatpush.msra.mxu0 0.0
    %491 = vmatpush.msra.mxu0 0.0
    %492 = vmatpush.msra.mxu0 0.0
    %493 = vmatpush.msra.mxu0 0.0
    %494 = vmatpush.msra.mxu0 0.0
    %495 = vmatpush.msra.mxu0 0.0
    %496 = vmatpush.msra.mxu0 0.0
    %497 = vmatpush.msra.mxu0 0.0
    %498 = vmatpush.msra.mxu0 0.0
    %499 = vmatpush.msra.mxu0 0.0
    %500 = vmatpush.msra.mxu0 0.0
    %501 = vmatpush.msra.mxu0 %v393
    %502 = vmatpush.msra.mxu0 %v381
    %503 = vmatpush.msra.mxu0 %v380
    %504 = vmatmul.f32.gmra.mxu0 %v243
    %v505 = vpop.f32.mrf.mxu0
    %v506 = vadd.f32 %v388, %v505
    %507 = vdwg.mxu0
    %v509 = vsel %vm158, %v487, 0
    %511 = vmatpush.msra.mxu0 0.0
    %512 = vmatpush.msra.mxu0 0.0
    %513 = vmatpush.msra.mxu0 0.0
    %514 = vmatpush.msra.mxu0 0.0
    %515 = vmatpush.msra.mxu0 0.0
    %516 = vmatpush.msra.mxu0 0.0
    %517 = vmatpush.msra.mxu0 0.0
    %518 = vmatpush.msra.mxu0 0.0
    %519 = vmatpush.msra.mxu0 0.0
    %520 = vmatpush.msra.mxu0 0.0
    %521 = vmatpush.msra.mxu0 0.0
    %522 = vmatpush.msra.mxu0 0.0
    %523 = vmatpush.msra.mxu0 0.0
    %524 = vmatpush.msra.mxu0 %v419
    %525 = vmatpush.msra.mxu0 %v384
    %526 = vmatpush.msra.mxu0 %v383
    %527 = vmatmul.f32.gmra.mxu0 %v509
    %v528 = vpop.f32.mrf.mxu0
    %v529 = vadd.f32 0.0, %v528
    %530 = vdwg.mxu0
    %v531 = vadd.f32 %v506, %v529
    %v532 = vtanh.pop %v531
    %533 = vmatpush.msra.mxu0 0.0
    %534 = vmatpush.msra.mxu0 0.0
    %535 = vmatpush.msra.mxu0 0.0
    %536 = vmatpush.msra.mxu0 0.0
    %537 = vmatpush.msra.mxu0 0.0
    %538 = vmatpush.msra.mxu0 0.0
    %539 = vmatpush.msra.mxu0 0.0
    %540 = vmatpush.msra.mxu0 0.0
    %541 = vmatpush.msra.mxu0 0.0
    %542 = vmatpush.msra.mxu0 0.0
    %543 = vmatpush.msra.mxu0 0.0
    %544 = vmatpush.msra.mxu0 0.0
    %545 = vmatpush.msra.mxu0 0.0
    %546 = vmatpush.msra.mxu0 %v393
    %547 = vmatpush.msra.mxu0 %v381
    %548 = vmatpush.msra.mxu0 %v380
    %549 = vmatmul.f32.gmra.mxu0 %v272
    %v550 = vpop.f32.mrf.mxu0
    %v551 = vadd.f32 %v388, %v550
    %552 = vdwg.mxu0
    %v554 = vsel %vm158, %v532, 0
    %556 = vmatpush.msra.mxu0 0.0
    %557 = vmatpush.msra.mxu0 0.0
    %558 = vmatpush.msra.mxu0 0.0
    %559 = vmatpush.msra.mxu0 0.0
    %560 = vmatpush.msra.mxu0 0.0
    %561 = vmatpush.msra.mxu0 0.0
    %562 = vmatpush.msra.mxu0 0.0
    %563 = vmatpush.msra.mxu0 0.0
    %564 = vmatpush.msra.mxu0 0.0
    %565 = vmatpush.msra.mxu0 0.0
    %566 = vmatpush.msra.mxu0 0.0
    %567 = vmatpush.msra.mxu0 0.0
    %568 = vmatpush.msra.mxu0 0.0
    %569 = vmatpush.msra.mxu0 %v419
    %570 = vmatpush.msra.mxu0 %v384
    %571 = vmatpush.msra.mxu0 %v383
    %572 = vmatmul.f32.gmra.mxu0 %v554
    %v573 = vpop.f32.mrf.mxu0
    %v574 = vadd.f32 0.0, %v573
    %575 = vdwg.mxu0
    %v576 = vadd.f32 %v551, %v574
    %v577 = vtanh.pop %v576
    %578 = vmatpush.msra.mxu0 0.0
    %579 = vmatpush.msra.mxu0 0.0
    %580 = vmatpush.msra.mxu0 0.0
    %581 = vmatpush.msra.mxu0 0.0
    %582 = vmatpush.msra.mxu0 0.0
    %583 = vmatpush.msra.mxu0 0.0
    %584 = vmatpush.msra.mxu0 0.0
    %585 = vmatpush.msra.mxu0 0.0
    %586 = vmatpush.msra.mxu0 0.0
    %587 = vmatpush.msra.mxu0 0.0
    %588 = vmatpush.msra.mxu0 0.0
    %589 = vmatpush.msra.mxu0 0.0
    %590 = vmatpush.msra.mxu0 0.0
    %591 = vmatpush.msra.mxu0 %v393
    %592 = vmatpush.msra.mxu0 %v381
    %593 = vmatpush.msra.mxu0 %v380
    %594 = vmatmul.f32.gmra.mxu0 %v297
    %v595 = vpop.f32.mrf.mxu0
    %v596 = vadd.f32 %v388, %v595
    %597 = vdwg.mxu0
    %v599 = vsel %vm158, %v577, 0
    %601 = vmatpush.msra.mxu0 0.0
    %602 = vmatpush.msra.mxu0 0.0
    %603 = vmatpush.msra.mxu0 0.0
    %604 = vmatpush.msra.mxu0 0.0
    %605 = vmatpush.msra.mxu0 0.0
    %606 = vmatpush.msra.mxu0 0.0
    %607 = vmatpush.msra.mxu0 0.0
    %608 = vmatpush.msra.mxu0 0.0
    %609 = vmatpush.msra.mxu0 0.0
    %610 = vmatpush.msra.mxu0 0.0
    %611 = vmatpush.msra.mxu0 0.0
    %612 = vmatpush.msra.mxu0 0.0
    %613 = vmatpush.msra.mxu0 0.0
    %614 = vmatpush.msra.mxu0 %v419
    %615 = vmatpush.msra.mxu0 %v384
    %616 = vmatpush.msra.mxu0 %v383
    %617 = vmatmul.f32.gmra.mxu0 %v599
    %v618 = vpop.f32.mrf.mxu0
    %v619 = vadd.f32 0.0, %v618
    %620 = vdwg.mxu0
    %v621 = vadd.f32 %v596, %v619
    %v622 = vtanh.pop %v621
    %623 = vmatpush.msra.mxu0 0.0
    %624 = vmatpush.msra.mxu0 0.0
    %625 = vmatpush.msra.mxu0 0.0
    %626 = vmatpush.msra.mxu0 0.0
    %627 = vmatpush.msra.mxu0 0.0
    %628 = vmatpush.msra.mxu0 0.0
    %629 = vmatpush.msra.mxu0 0.0
    %630 = vmatpush.msra.mxu0 0.0
    %631 = vmatpush.msra.mxu0 0.0
    %632 = vmatpush.msra.mxu0 0.0
    %633 = vmatpush.msra.mxu0 0.0
    %634 = vmatpush.msra.mxu0 0.0
    %635 = vmatpush.msra.mxu0 0.0
    %636 = vmatpush.msra.mxu0 %v393
    %637 = vmatpush.msra.mxu0 %v381
    %638 = vmatpush.msra.mxu0 %v380
    %639 = vmatmul.f32.gmra.mxu0 %v326
    %v640 = vpop.f32.mrf.mxu0
    %v641 = vadd.f32 %v388, %v640
    %642 = vdwg.mxu0
    %v644 = vsel %vm158, %v622, 0
    %646 = vmatpush.msra.mxu0 0.0
    %647 = vmatpush.msra.mxu0 0.0
    %648 = vmatpush.msra.mxu0 0.0
    %649 = vmatpush.msra.mxu0 0.0
    %650 = vmatpush.msra.mxu0 0.0
    %651 = vmatpush.msra.mxu0 0.0
    %652 = vmatpush.msra.mxu0 0.0
    %653 = vmatpush.msra.mxu0 0.0
    %654 = vmatpush.msra.mxu0 0.0
    %655 = vmatpush.msra.mxu0 0.0
    %656 = vmatpush.msra.mxu0 0.0
    %657 = vmatpush.msra.mxu0 0.0
    %658 = vmatpush.msra.mxu0 0.0
    %659 = vmatpush.msra.mxu0 %v419
    %660 = vmatpush.msra.mxu0 %v384
    %661 = vmatpush.msra.mxu0 %v383
    %662 = vmatmul.f32.gmra.mxu0 %v644
    %v663 = vpop.f32.mrf.mxu0
    %v664 = vadd.f32 0.0, %v663
    %665 = vdwg.mxu0
    %v666 = vadd.f32 %v641, %v664
    %v667 = vtanh.pop %v666
    %668 = vmatpush.msra.mxu0 0.0
    %669 = vmatpush.msra.mxu0 0.0
    %670 = vmatpush.msra.mxu0 0.0
    %671 = vmatpush.msra.mxu0 0.0
    %672 = vmatpush.msra.mxu0 0.0
    %673 = vmatpush.msra.mxu0 0.0
    %674 = vmatpush.msra.mxu0 0.0
    %675 = vmatpush.msra.mxu0 0.0
    %676 = vmatpush.msra.mxu0 0.0
    %677 = vmatpush.msra.mxu0 0.0
    %678 = vmatpush.msra.mxu0 0.0
    %679 = vmatpush.msra.mxu0 0.0
    %680 = vmatpush.msra.mxu0 0.0
    %681 = vmatpush.msra.mxu0 %v393
    %682 = vmatpush.msra.mxu0 %v381
    %683 = vmatpush.msra.mxu0 %v380
    %684 = vmatmul.f32.gmra.mxu0 %v351
    %v685 = vpop.f32.mrf.mxu0
    %v686 = vadd.f32 %v388, %v685
    %687 = vdwg.mxu0
    %v689 = vsel %vm158, %v667, 0
    %691 = vmatpush.msra.mxu0 0.0
    %692 = vmatpush.msra.mxu0 0.0
    %693 = vmatpush.msra.mxu0 0.0
    %694 = vmatpush.msra.mxu0 0.0
    %695 = vmatpush.msra.mxu0 0.0
    %696 = vmatpush.msra.mxu0 0.0
    %697 = vmatpush.msra.mxu0 0.0
    %698 = vmatpush.msra.mxu0 0.0
    %699 = vmatpush.msra.mxu0 0.0
    %700 = vmatpush.msra.mxu0 0.0
    %701 = vmatpush.msra.mxu0 0.0
    %702 = vmatpush.msra.mxu0 0.0
    %703 = vmatpush.msra.mxu0 0.0
    %704 = vmatpush.msra.mxu0 %v419
    %705 = vmatpush.msra.mxu0 %v384
    %706 = vmatpush.msra.mxu0 %v383
    %707 = vmatmul.f32.gmra.mxu0 %v689
    %v708 = vpop.f32.mrf.mxu0
    %v709 = vadd.f32 0.0, %v708
    %710 = vdwg.mxu0
    %v711 = vadd.f32 %v686, %v709
    %v712 = vtanh.pop %v711
    %v714 = vrot.slane %v377, 4
    %v715 = vsel %vm158, %v714, 0
    %717 = vmatpush.msra.mxu0 0.0
    %718 = vmatpush.msra.mxu0 0.0
    %719 = vmatpush.msra.mxu0 0.0
    %720 = vmatpush.msra.mxu0 0.0
    %721 = vmatpush.msra.mxu0 0.0
    %722 = vmatpush.msra.mxu0 0.0
    %723 = vmatpush.msra.mxu0 0.0
    %724 = vmatpush.msra.mxu0 0.0
    %725 = vmatpush.msra.mxu0 0.0
    %726 = vmatpush.msra.mxu0 0.0
    %727 = vmatpush.msra.mxu0 0.0
    %728 = vmatpush.msra.mxu0 0.0
    %729 = vmatpush.msra.mxu0 0.0
    %730 = vmatpush.msra.mxu0 %v393
    %731 = vmatpush.msra.mxu0 %v381
    %732 = vmatpush.msra.mxu0 %v380
    %733 = vmatmul.f32.gmra.mxu0 %v715
    %v734 = vpop.f32.mrf.mxu0
    %v735 = vadd.f32 %v388, %v734
    %736 = vdwg.mxu0
    %v738 = vsel %vm158, %v712, 0
    %740 = vmatpush.msra.mxu0 0.0
    %741 = vmatpush.msra.mxu0 0.0
    %742 = vmatpush.msra.mxu0 0.0
    %743 = vmatpush.msra.mxu0 0.0
    %744 = vmatpush.msra.mxu0 0.0
    %745 = vmatpush.msra.mxu0 0.0
    %746 = vmatpush.msra.mxu0 0.0
    %747 = vmatpush.msra.mxu0 0.0
    %748 = vmatpush.msra.mxu0 0.0
    %749 = vmatpush.msra.mxu0 0.0
    %750 = vmatpush.msra.mxu0 0.0
    %751 = vmatpush.msra.mxu0 0.0
    %752 = vmatpush.msra.mxu0 0.0
    %753 = vmatpush.msra.mxu0 %v419
    %754 = vmatpush.msra.mxu0 %v384
    %755 = vmatpush.msra.mxu0 %v383
    %756 = vmatmul.f32.gmra.mxu0 %v738
    %v757 = vpop.f32.mrf.mxu0
    %v758 = vadd.f32 0.0, %v757
    %759 = vdwg.mxu0
    %v760 = vadd.f32 %v735, %v758
    %v761 = vtanh.pop %v760
    %s762 = scalar_lea.vmem [#allocation11], 4
    %vm763 = vcmask 158720
    %764 = vst.msk [vmem:[%s762] sm:$0xf] %vm763, %v761
    %v765 = vmax.f32 %v761, 0.0
    %v766 = vld [vmem:[%s8] sm:$0x1]
    %v768 = vperm.slane %v766, 0
    %v770 = vmul.f32 %v765, %v768
    %v771 = vsel %vm763, %v770, 0.0
    %772 = vadd.xlane.f32.xlu0 %v771
    %v773 = vpop.xlane.xlu0 %772
    %v774 = vld [vmem:[#allocation2] sm:$0x1]
    %v776 = vperm.slane %v774, 0
    %v778 = vadd.f32 %v773, %v776
    %vm779 = vcmask 3072
    %780 = vst.msk [vmem:[%s10] sm:$0xf] %vm779, %v778
    // Predicated region
    $region58: #{rnn_net_forward.1} parent=1 // pred_check
      _
    $region59: #{rnn_net_forward.1} parent=1 // pred_check_branch
      %782 = sbr.rel (0) target = $region61
    $region60: #{rnn_net_forward.1} parent=1 // pred_region
      _
    $region61: #{rnn_net_forward.1} parent=1 // pred_fallthru
      _
    // Predicated region
    $region62: #{rnn_net_forward.1} parent=1 // pred_check
      _
    $region63: #{rnn_net_forward.1} parent=1 // pred_check_branch
      %784 = sbr.rel (0) target = $region65
    $region64: #{rnn_net_forward.1} parent=1 // pred_region
      %786 = vsyncadd [#allocation5], 0
      %s787 = sshll.u32 [#allocation11], 4
      %s788 = int_to_ptr.vmem [resolvable:$true] %s787
      %s789 = sshll.u32 %s11, 4
      %s790 = int_to_ptr.hbm [resolvable:$true] %s789
      %795 = dma.vmem_to_hbm [thread:$0]  %s788, 128, %s790, [#allocation5], 64, 64, 4
    $region65: #{rnn_net_forward.1} parent=1 // pred_fallthru
      _
    // Predicated region
    $region66: #{rnn_net_forward.1} parent=1 // pred_check
      _
    $region67: #{rnn_net_forward.1} parent=1 // pred_check_branch
      %797 = sbr.rel (0) target = $region69
    $region68: #{rnn_net_forward.1} parent=1 // pred_region
      _
    $region69: #{rnn_net_forward.1} parent=1 // pred_fallthru
      _
    // Predicated region
    $region70: #{rnn_net_forward.1} parent=1 // pred_check
      _
    $region71: #{rnn_net_forward.1} parent=1 // pred_check_branch
      %799 = sbr.rel (0) target = $region73
    $region72: #{rnn_net_forward.1} parent=1 // pred_region
      %801 = dma.done [#allocation5], 128
    $region73: #{rnn_net_forward.1} parent=1 // pred_fallthru
      _
    %802 = vsyncpa [#allocation4], 1
    %803 = vsyncpa [#allocation7], 1
    %804 = vsyncpa [#allocation10], 1
    %805 = vsyncpa [#allocation5], 1

</llo_original>
